<compile_context>
chip_gen: v6e
topology: v6e:2x2x1
jax: 0.10.0
libtpu: 0.0.40
codegen_flags: <defaults>
</compile_context>

<pallas_src>
import jax
import jax.numpy as jnp
import numpy as np
from jax.experimental import pallas as pl
from jax.experimental.pallas import tpu as pltpu

# ---- shapes implied by the module ------------------------------------------
NMUSCLES = 2                       # synthetic choice (traindata-dependent in the original)
BATCH = 8                          # small example batch
K = 5 * NMUSCLES                   # conv kernel size = 10
STRIDE = NMUSCLES                  # conv stride = 2
L_IN = 20 * NMUSCLES               # 40 features / sample  (=> 16 conv outs, 8 after pool)
L_CONV = (L_IN - K) // STRIDE + 1  # 16
L_POOL = L_CONV // 2               # 8  == fc1 in_features
H1, H2 = 128, 32

SLAB_LANES = 128


def _cdiv(a, b):
    return (a + b - 1) // b


def _round_up(n, m):
    return ((n + m - 1) // m) * m


# ---- packed parameter slab row layout (each section 8-row aligned) ----------
R_WE = 0                            # rows 0..39   : even-output Toeplitz (40,128), lanes 0..7
R_WO = R_WE + L_IN                  # rows 40..79  : odd-output Toeplitz (40,128), lanes 0..7
R_BC = R_WO + L_IN                  # row 80       : conv bias broadcast to all lanes
R_W1 = _round_up(R_BC + 1, 8)       # rows 88..215 : fc1 weight (128,128); rows >=8 are zero
R_B1 = R_W1 + H1                    # row 216      : fc1 bias (128,)
R_W2 = _round_up(R_B1 + 1, 8)       # rows 224..351: fc2 weight (128,128); lanes >=32 are zero
R_B2 = R_W2 + H1                    # row 352      : fc2 bias (lanes 0..31)
R_W3 = _round_up(R_B2 + 1, 8)       # row 360      : fc3 weight row (lanes 0..31)
R_B3 = R_W3 + 1                     # row 361      : fc3 bias broadcast to all lanes
SLAB_ROWS = _round_up(R_B3 + 1, 8)  # 368 (sublane aligned)


def model5_kernel(x_ref, p_ref, o_ref):
    x = x_ref[...]                                                        # (TB, 40)

    # Conv1d(1->1, K, stride) + MaxPool1d(2) as two full-128-lane Toeplitz
    # matmuls (even conv outputs in lanes 0..7 of one, odd outputs in lanes
    # 0..7 of the other) and an elementwise max.  Conv bias added after the
    # max (exact: max(a,b)+c == max(a+c,b+c)), then ReLU.  Lanes 8..127 hold
    # finite junk that is neutralized by the zero rows of the padded fc1.
    we = p_ref[R_WE:R_WE + L_IN, :]                                       # (40, 128)
    wo = p_ref[R_WO:R_WO + L_IN, :]                                       # (40, 128)
    conv_e = jnp.dot(x, we, preferred_element_type=jnp.float32)           # (TB, 128)
    conv_o = jnp.dot(x, wo, preferred_element_type=jnp.float32)           # (TB, 128)
    bc = p_ref[R_BC:R_BC + 1, :]                                          # (1, 128)
    h = jnp.maximum(jnp.maximum(conv_e, conv_o) + bc, 0.0)                # (TB, 128)

    # fc1 + ReLU (weight zero-padded to 128 rows -> junk lanes contribute 0)
    w1 = p_ref[R_W1:R_W1 + H1, :]                                         # (128, 128)
    b1 = p_ref[R_B1:R_B1 + 1, :]                                          # (1, 128)
    h = jnp.maximum(jnp.dot(h, w1, preferred_element_type=jnp.float32) + b1, 0.0)
    # TODO(synk): nn.Dropout(0.5) is identity in eval mode; training-mode masking not implemented.

    # fc2 + ReLU (weight zero-padded to 128 output lanes -> lanes >=32 stay 0)
    w2 = p_ref[R_W2:R_W2 + H1, :]                                         # (128, 128)
    b2 = p_ref[R_B2:R_B2 + 1, :]                                          # (1, 128)
    h = jnp.maximum(jnp.dot(h, w2, preferred_element_type=jnp.float32) + b2, 0.0)

    # fc3 (32 -> 1) on the VPU/XLU: broadcast multiply + lane reduce.  The
    # reduction result is produced as a (TB//128, 128) lane-dense block so the
    # output store is full-width (no masked vst.msk, tiny out buffers).
    w3 = p_ref[R_W3:R_W3 + 1, :]                                          # (1, 128)
    b3 = p_ref[R_B3:R_B3 + 1, :]                                          # (1, 128) scalar bcast
    g = x.shape[0] // 128
    y = jnp.sum((h * w3).reshape(g, 128, SLAB_LANES), axis=-1)            # (g, 128)
    o_ref[...] = jax.nn.sigmoid(y + b3)


def model5_forward(x, param_slab, tb=2048):
    """x: (B, L_IN) f32, param_slab: (SLAB_ROWS, 128) f32 -> (B, 1) f32."""
    B = x.shape[0]
    assert x.shape[1] == L_IN

    # Pad only to the 128-row lane granularity of the lane-dense output
    # (<=127 rows), never to a full tile multiple.
    G = _cdiv(B, 128)                       # 128-row groups of batch
    pad = G * 128 - B
    if pad:
        x = jnp.pad(x, ((0, pad), (0, 0)))

    # Tile selection: as few grid steps as possible, but keep >=2 steps for
    # large batches so a v7x megacore can shard the batch axis across both
    # TensorCores.  Cap at 8192 rows/tile for v7x's 64 MiB VMEM budget.
    tb = min(max(int(tb), 128), 8192)
    g_cap = max(tb // 128, 1)
    n_steps = _cdiv(G, g_cap)
    if n_steps == 1 and G >= 16:
        n_steps = 2
    g_step = _cdiv(G, n_steps)
    if n_steps > 1:
        g_step = _round_up(g_step, 8)       # out-block sublane alignment
        n_steps = _cdiv(G, g_step)          # ragged last tile handled by Pallas
    TB = 128 * g_step                       # rows of x per grid step

    out = pl.pallas_call(
        model5_kernel,
        out_shape=jax.ShapeDtypeStruct((G, SLAB_LANES), jnp.float32),
        grid=(n_steps,),
        in_specs=[
            pl.BlockSpec((TB, L_IN), lambda i: (i, 0)),                 # batch tile of x
            pl.BlockSpec((SLAB_ROWS, SLAB_LANES), lambda i: (0, 0)),    # weights, resident
        ],
        out_specs=pl.BlockSpec((g_step, SLAB_LANES), lambda i: (i, 0)),  # lane-dense
        compiler_params=pltpu.CompilerParams(
            dimension_semantics=("parallel",)),
    )(x, param_slab)

    # out[r, c] is the prediction for batch row r*128 + c.
    return out.reshape(-1)[:B].reshape(B, 1)


def init_params(key):
    """Deterministic init mirroring the shapes in Model5.__init__ (uniform, fan-in scaled).

    Returns (param_slab, raw_params): the packed (SLAB_ROWS, 128) kernel slab
    and the raw numpy weights for the reference forward.
    """
    ks = jax.random.split(key, 8)

    def unif(k, shape, fan_in):
        bound = 1.0 / np.sqrt(fan_in)
        return np.asarray(jax.random.uniform(k, shape, jnp.float32, -bound, bound))

    w_conv = unif(ks[0], (K,), K)              # Conv1d weight (1,1,K) squeezed
    b_conv = float(unif(ks[1], (), K))         # Conv1d bias (scalar)
    w1 = unif(ks[2], (L_POOL, H1), L_POOL)     # fc1 (stored (in, out))
    b1 = unif(ks[3], (H1,), L_POOL)
    w2 = unif(ks[4], (H1, H2), H1)             # fc2
    b2 = unif(ks[5], (H2,), H1)
    w3 = unif(ks[6], (H2, 1), H2)              # fc3
    b3 = float(unif(ks[7], (), H2))

    # ---- pack everything into one lane-aligned slab (built once, host side) ----
    slab = np.zeros((SLAB_ROWS, SLAB_LANES), np.float32)
    # Two Toeplitz blocks: even conv outputs -> lanes 0..7 of block WE,
    # odd conv outputs -> lanes 0..7 of block WO.
    for o in range(L_CONV):
        base = R_WE if (o % 2 == 0) else R_WO
        lane = o // 2
        slab[base + o * STRIDE: base + o * STRIDE + K, lane] = w_conv
    slab[R_BC, :] = b_conv                     # bias broadcast across all lanes
    slab[R_W1:R_W1 + L_POOL, :H1] = w1         # rows 8..127 stay zero
    slab[R_B1, :H1] = b1
    slab[R_W2:R_W2 + H1, :H2] = w2             # lanes 32..127 stay zero
    slab[R_B2, :H2] = b2
    slab[R_W3, :H2] = w3[:, 0]
    slab[R_B3, :] = b3                         # scalar broadcast across all lanes

    raw_params = (w_conv, b_conv, w1, b1, w2, b2, w3, b3)
    return jnp.asarray(slab), raw_params


def ref_forward(x, raw):
    """Pure-numpy reference matching the PyTorch forward (eval mode)."""
    w_conv, b_conv, w1, b1, w2, b2, w3, b3 = raw
    x = np.asarray(x, np.float32)
    B = x.shape[0]
    conv = np.zeros((B, L_CONV), np.float32)
    for o in range(L_CONV):
        conv[:, o] = x[:, o * STRIDE: o * STRIDE + K] @ w_conv + b_conv
    pooled = conv.reshape(B, L_POOL, 2).max(-1)          # MaxPool1d(2)
    h = np.maximum(pooled, 0.0)                          # ReLU
    h = np.maximum(h @ w1 + b1, 0.0)                     # fc1 + ReLU
    h = np.maximum(h @ w2 + b2, 0.0)                     # fc2 + ReLU (dropout = identity, eval)
    y = h @ w3 + b3                                      # fc3
    return 1.0 / (1.0 + np.exp(-y))                      # sigmoid


if __name__ == "__main__":
    key = jax.random.PRNGKey(0)
    kx, kp = jax.random.split(key)
    x = jax.random.normal(kx, (BATCH, L_IN), jnp.float32)

    param_slab, raw_params = init_params(kp)

    out = model5_forward(x, param_slab)
    out = jax.block_until_ready(out)

    expected = ref_forward(x, raw_params)
    assert out.shape == (BATCH, 1), out.shape
    np.testing.assert_allclose(np.asarray(out), expected, rtol=1e-5, atol=1e-5)

    print("KERNEL_OK")
</pallas_src>

<mosaic_0001>
module attributes {stable_mosaic.version = 11 : i64} {
  func.func @model5_kernel(%arg0: i32, %arg1: memref<128x40xf32, #tpu.memory_space<vmem>>, %arg2: memref<368x128xf32, #tpu.memory_space<vmem>>, %arg3: memref<1x128xf32, #tpu.memory_space<vmem>>) attributes {dimension_semantics = [#tpu.dimension_semantics<parallel>], iteration_bounds = array<i64: 1>, scalar_prefetch = 0 : i64, scratch_operands = 0 : i64, tpu.core_type = #tpu.core_type<tc>, window_params = [{transform_indices = @transform_0, window_bounds = array<i64: 128, 40>}, {pipeline_mode = #tpu.pipeline_mode<synchronous>, transform_indices = @transform_1, window_bounds = array<i64: 368, 128>}, {transform_indices = @transform_2, window_bounds = array<i64: 1, 128>}]} {
    %c0 = arith.constant 0 : index
    %c0_0 = arith.constant 0 : index
    %0 = vector.load %arg1[%c0, %c0_0] : memref<128x40xf32, #tpu.memory_space<vmem>>, vector<128x40xf32>
    %c0_1 = arith.constant 0 : index
    %c0_2 = arith.constant 0 : index
    %1 = vector.load %arg2[%c0_1, %c0_2] : memref<368x128xf32, #tpu.memory_space<vmem>>, vector<40x128xf32>
    %c40 = arith.constant 40 : index
    %c0_3 = arith.constant 0 : index
    %2 = vector.load %arg2[%c40, %c0_3] : memref<368x128xf32, #tpu.memory_space<vmem>>, vector<40x128xf32>
    %cst = arith.constant dense<0.000000e+00> : vector<128x128xf32>
    %3 = tpu.matmul %0, %1, %cst {dimension_numbers = #tpu.dot_dimension_numbers<[1], [0], [0], [1], [0, 0, 1, 1], [], []>} : vector<128x40xf32>, vector<40x128xf32>, vector<128x128xf32> -> vector<128x128xf32>
    %cst_4 = arith.constant dense<0.000000e+00> : vector<128x128xf32>
    %4 = tpu.matmul %0, %2, %cst_4 {dimension_numbers = #tpu.dot_dimension_numbers<[1], [0], [0], [1], [0, 0, 1, 1], [], []>} : vector<128x40xf32>, vector<40x128xf32>, vector<128x128xf32> -> vector<128x128xf32>
    %c80 = arith.constant 80 : index
    %c0_5 = arith.constant 0 : index
    %5 = vector.load %arg2[%c80, %c0_5] : memref<368x128xf32, #tpu.memory_space<vmem>>, vector<1x128xf32>
    %6 = arith.maximumf %3, %4 : vector<128x128xf32>
    %7 = vector.broadcast %5 : vector<1x128xf32> to vector<128x128xf32>
    %8 = arith.addf %6, %7 : vector<128x128xf32>
    %cst_6 = arith.constant 0.000000e+00 : f32
    %9 = vector.broadcast %cst_6 : f32 to vector<128x128xf32>
    %10 = arith.maximumf %8, %9 : vector<128x128xf32>
    %c88 = arith.constant 88 : index
    %c0_7 = arith.constant 0 : index
    %11 = vector.load %arg2[%c88, %c0_7] : memref<368x128xf32, #tpu.memory_space<vmem>>, vector<128x128xf32>
    %c216 = arith.constant 216 : index
    %c0_8 = arith.constant 0 : index
    %12 = vector.load %arg2[%c216, %c0_8] : memref<368x128xf32, #tpu.memory_space<vmem>>, vector<1x128xf32>
    %cst_9 = arith.constant dense<0.000000e+00> : vector<128x128xf32>
    %13 = tpu.matmul %10, %11, %cst_9 {dimension_numbers = #tpu.dot_dimension_numbers<[1], [0], [0], [1], [0, 0, 1, 1], [], []>} : vector<128x128xf32>, vector<128x128xf32>, vector<128x128xf32> -> vector<128x128xf32>
    %14 = vector.broadcast %12 : vector<1x128xf32> to vector<128x128xf32>
    %15 = arith.addf %13, %14 : vector<128x128xf32>
    %cst_10 = arith.constant 0.000000e+00 : f32
    %16 = vector.broadcast %cst_10 : f32 to vector<128x128xf32>
    %17 = arith.maximumf %15, %16 : vector<128x128xf32>
    %c224 = arith.constant 224 : index
    %c0_11 = arith.constant 0 : index
    %18 = vector.load %arg2[%c224, %c0_11] : memref<368x128xf32, #tpu.memory_space<vmem>>, vector<128x128xf32>
    %c352 = arith.constant 352 : index
    %c0_12 = arith.constant 0 : index
    %19 = vector.load %arg2[%c352, %c0_12] : memref<368x128xf32, #tpu.memory_space<vmem>>, vector<1x128xf32>
    %cst_13 = arith.constant dense<0.000000e+00> : vector<128x128xf32>
    %20 = tpu.matmul %17, %18, %cst_13 {dimension_numbers = #tpu.dot_dimension_numbers<[1], [0], [0], [1], [0, 0, 1, 1], [], []>} : vector<128x128xf32>, vector<128x128xf32>, vector<128x128xf32> -> vector<128x128xf32>
    %21 = vector.broadcast %19 : vector<1x128xf32> to vector<128x128xf32>
    %22 = arith.addf %20, %21 : vector<128x128xf32>
    %cst_14 = arith.constant 0.000000e+00 : f32
    %23 = vector.broadcast %cst_14 : f32 to vector<128x128xf32>
    %24 = arith.maximumf %22, %23 : vector<128x128xf32>
    %c360 = arith.constant 360 : index
    %c0_15 = arith.constant 0 : index
    %25 = vector.load %arg2[%c360, %c0_15] : memref<368x128xf32, #tpu.memory_space<vmem>>, vector<1x128xf32>
    %c361 = arith.constant 361 : index
    %c0_16 = arith.constant 0 : index
    %26 = vector.load %arg2[%c361, %c0_16] : memref<368x128xf32, #tpu.memory_space<vmem>>, vector<1x128xf32>
    %27 = vector.broadcast %25 : vector<1x128xf32> to vector<128x128xf32>
    %28 = arith.mulf %24, %27 : vector<128x128xf32>
    %29 = vector.shape_cast %28 : vector<128x128xf32> to vector<1x128x128xf32>
    %cst_17 = arith.constant dense<0.000000e+00> : vector<1x128xf32>
    %30 = vector.multi_reduction <add>, %29, %cst_17 [2] : vector<1x128x128xf32> to vector<1x128xf32>
    %31 = arith.addf %30, %26 : vector<1x128xf32>
    %32 = arith.negf %31 : vector<1x128xf32>
    %33 = math.exp %32 : vector<1x128xf32>
    %cst_18 = arith.constant 1.000000e+00 : f32
    %34 = vector.broadcast %cst_18 : f32 to vector<1x128xf32>
    %35 = arith.addf %34, %33 : vector<1x128xf32>
    %36 = arith.divf %34, %35 : vector<1x128xf32>
    %c0_19 = arith.constant 0 : index
    %c0_20 = arith.constant 0 : index
    %37 = vector.load %arg3[%c0_19, %c0_20] : memref<1x128xf32, #tpu.memory_space<vmem>>, vector<1x128xf32>
    tpu.vector_store %arg3[%c0_19, %c0_20], %36 {strides = array<i32>} : memref<1x128xf32, #tpu.memory_space<vmem>>, vector<1x128xf32>,
    return
  }
  func.func @transform_0(%arg0: i32) -> (i32, i32) {
    %c0_i32 = arith.constant 0 : i32
    %c0_i32_0 = arith.constant 0 : i32
    return %arg0, %c0_i32 : i32, i32
  }
  func.func @transform_1(%arg0: i32) -> (i32, i32) {
    %c0_i32 = arith.constant 0 : i32
    %c0_i32_0 = arith.constant 0 : i32
    %c0_i32_1 = arith.constant 0 : i32
    return %c0_i32, %c0_i32_0 : i32, i32
  }
  func.func @transform_2(%arg0: i32) -> (i32, i32) {
    %c0_i32 = arith.constant 0 : i32
    %c0_i32_0 = arith.constant 0 : i32
    return %arg0, %c0_i32 : i32, i32
  }
}

</mosaic_0001>

<llo_original>
// kernel: tpu_custom_call.1
$region0: #{tpu_custom_call.1}
  #allocation0 [shape = 'u32[]', space=smem, size = 0x4, offset = 0x4, fixed_abs, tag = 'smem constant byte address 0x4 - core index']
  #allocation1 [shape = 'u32[144,128]{1,0:T(1,128)}', space=vmem, size = 0x12000, scoped, tag = 'internal scratch']
  %s0 = inlined_call_operand.vmem [shape: f32[128,40], index: 0, kind: input, shape index: {}]
  %s1 = inlined_call_operand.hbm [shape: f32[368,128], index: 1, kind: input, shape index: {}]
  %s2 = inlined_call_operand.hbm [shape: f32[1,128], index: 2, kind: output, shape index: {}]
  %s3 = sld [smem:[#allocation0]]
  $region22: #{tpu_custom_call.1} parent=0
    _
  %s5 = ssub.s32 1, %s3
  %s6 = scalar_select 0, %s5, %s3
  $region1: #{tpu_custom_call.1} parent=0
    #allocation2 [shape = 'u8[188416]{0}', space=vmem, size = 0x2e000, scoped, tag = 'input window, operand 1, single buffered']
    #allocation3 [shape = 's32[1]{0}', space=sflag, size = 0x4, scoped, tag = 'scoped memory for tpu_custom_call.1']
    #allocation4 [shape = 's32[1]{0}', space=sflag, size = 0x4, scoped, tag = 'scoped memory for tpu_custom_call.1']
    #allocation5 [shape = 'u8[512]{0}', space=vmem, size = 0x400, scoped, tag = 'output window, operand 0, single buffered']
    %7 = vsyncpa [#allocation3], 0
    %8 = vsyncpa [#allocation4], 0
    // Predicated region
    $region2: #{tpu_custom_call.1} parent=1 // pred_check
      _
    $region3: #{tpu_custom_call.1} parent=1 // pred_check_branch
      %10 = sbr.rel (0) target = $region5
    $region4: #{tpu_custom_call.1} parent=1 // pred_region
      _
    $region5: #{tpu_custom_call.1} parent=1 // pred_fallthru
      _
    // Predicated region
    $region6: #{tpu_custom_call.1} parent=1 // pred_check
      _
    $region7: #{tpu_custom_call.1} parent=1 // pred_check_branch
      %12 = sbr.rel (0) target = $region9
    $region8: #{tpu_custom_call.1} parent=1 // pred_region
      %s14 = ssub.s32 5888, 5888
      %15 = vsyncadd [#allocation3], %s14
      %s16 = sshll.u32 [#allocation2], 4
      %s17 = int_to_ptr.vmem [resolvable:$true] %s16
      %22 = dma.hbm_to_vmem [thread:$0]  %s1, 5888, %s17, [#allocation3], 128, 128, 8
    $region9: #{tpu_custom_call.1} parent=1 // pred_fallthru
      _
    // Predicated region
    $region10: #{tpu_custom_call.1} parent=1 // pred_check
      _
    $region11: #{tpu_custom_call.1} parent=1 // pred_check_branch
      %24 = sbr.rel (0) target = $region13
    $region12: #{tpu_custom_call.1} parent=1 // pred_region
      %25 = dma.done [#allocation3], 5888
    $region13: #{tpu_custom_call.1} parent=1 // pred_fallthru
      _
    %v26 = vld [vmem:[%s0] sm:$0xff]
    %v27 = vld [vmem:[%s0 + $0x8] sm:$0xff]
    %v28 = vld [vmem:[%s0 + $0x10] sm:$0xff]
    %v29 = vld [vmem:[%s0 + $0x18] sm:$0xff]
    %v30 = vld [vmem:[%s0 + $0x20] sm:$0xff]
    %v31 = vld [vmem:[%s0 + $0x28] sm:$0xff]
    %v32 = vld [vmem:[%s0 + $0x30] sm:$0xff]
    %v33 = vld [vmem:[%s0 + $0x38] sm:$0xff]
    %v34 = vld [vmem:[%s0 + $0x40] sm:$0xff]
    %v35 = vld [vmem:[%s0 + $0x48] sm:$0xff]
    %v36 = vld [vmem:[%s0 + $0x50] sm:$0xff]
    %v37 = vld [vmem:[%s0 + $0x58] sm:$0xff]
    %v38 = vld [vmem:[%s0 + $0x60] sm:$0xff]
    %v39 = vld [vmem:[%s0 + $0x68] sm:$0xff]
    %v40 = vld [vmem:[%s0 + $0x70] sm:$0xff]
    %v41 = vld [vmem:[%s0 + $0x78] sm:$0xff]
    %v42 = vld [vmem:[#allocation2] sm:$0xff]
    %v43 = vld [vmem:[#allocation2 + $0x8] sm:$0xff]
    %v44 = vld [vmem:[#allocation2 + $0x10] sm:$0xff]
    %v45 = vld [vmem:[#allocation2 + $0x18] sm:$0xff]
    %v46 = vld [vmem:[#allocation2 + $0x20] sm:$0xff]
    %v47 = vld [vmem:[#allocation2 + $0x28] sm:$0xff]
    %v48 = vld [vmem:[#allocation2 + $0x30] sm:$0xff]
    %v49 = vld [vmem:[#allocation2 + $0x38] sm:$0xff]
    %v50 = vld [vmem:[#allocation2 + $0x40] sm:$0xff]
    %v51 = vld [vmem:[#allocation2 + $0x48] sm:$0xff]
    %vm52 = vcmask 326656
    %v54 = vsel %vm52, %v26, 0
    %v57 = vsel %vm52, %v27, 0
    %v60 = vsel %vm52, %v28, 0
    %v63 = vsel %vm52, %v29, 0
    %v66 = vsel %vm52, %v30, 0
    %v69 = vsel %vm52, %v31, 0
    %v72 = vsel %vm52, %v32, 0
    %v75 = vsel %vm52, %v33, 0
    %v78 = vsel %vm52, %v34, 0
    %v81 = vsel %vm52, %v35, 0
    %v84 = vsel %vm52, %v36, 0
    %v87 = vsel %vm52, %v37, 0
    %v90 = vsel %vm52, %v38, 0
    %v93 = vsel %vm52, %v39, 0
    %v96 = vsel %vm52, %v40, 0
    %v99 = vsel %vm52, %v41, 0
    %101 = vmatprep.subr.mxu0 0.0
    %102 = vmatpush1.msra.mxu0 0.0
    %103 = vmatprep.subr.mxu0 0.0
    %104 = vmatpush1.msra.mxu0 0.0
    %105 = vmatprep.subr.mxu0 0.0
    %106 = vmatpush1.msra.mxu0 0.0
    %107 = vmatprep.subr.mxu0 0.0
    %108 = vmatpush1.msra.mxu0 0.0
    %109 = vmatprep.subr.mxu0 0.0
    %110 = vmatpush1.msra.mxu0 0.0
    %111 = vmatprep.subr.mxu0 0.0
    %112 = vmatpush1.msra.mxu0 0.0
    %113 = vmatprep.subr.mxu0 0.0
    %114 = vmatpush1.msra.mxu0 0.0
    %115 = vmatprep.subr.mxu0 0.0
    %116 = vmatpush1.msra.mxu0 0.0
    %117 = vmatprep.subr.mxu0 0.0
    %118 = vmatpush1.msra.mxu0 0.0
    %119 = vmatprep.subr.mxu0 0.0
    %120 = vmatpush1.msra.mxu0 0.0
    %121 = vmatprep.subr.mxu0 0.0
    %122 = vmatpush1.msra.mxu0 0.0
    %123 = vmatprep.subr.mxu0 0.0
    %124 = vmatpush1.msra.mxu0 %v46
    %125 = vmatprep.subr.mxu0 0.0
    %126 = vmatpush1.msra.mxu0 %v45
    %127 = vmatprep.subr.mxu0 0.0
    %128 = vmatpush1.msra.mxu0 %v44
    %129 = vmatprep.subr.mxu0 0.0
    %130 = vmatpush1.msra.mxu0 %v43
    %131 = vmatprep.subr.mxu0 0.0
    %132 = vmatpush1.msra.mxu0 %v42
    %133 = vmatprep.subr.mxu0 0.0
    %134 = vmatpush2.msra.mxu0 0.0
    %135 = vmatprep.subr.mxu0 0.0
    %136 = vmatpush2.msra.mxu0 0.0
    %137 = vmatprep.subr.mxu0 0.0
    %138 = vmatpush2.msra.mxu0 0.0
    %139 = vmatprep.subr.mxu0 0.0
    %140 = vmatpush2.msra.mxu0 0.0
    %141 = vmatprep.subr.mxu0 0.0
    %142 = vmatpush2.msra.mxu0 0.0
    %143 = vmatprep.subr.mxu0 0.0
    %144 = vmatpush2.msra.mxu0 0.0
    %145 = vmatprep.subr.mxu0 0.0
    %146 = vmatpush2.msra.mxu0 0.0
    %147 = vmatprep.subr.mxu0 0.0
    %148 = vmatpush2.msra.mxu0 0.0
    %149 = vmatprep.subr.mxu0 0.0
    %150 = vmatpush2.msra.mxu0 0.0
    %151 = vmatprep.subr.mxu0 0.0
    %152 = vmatpush2.msra.mxu0 0.0
    %153 = vmatprep.subr.mxu0 0.0
    %154 = vmatpush2.msra.mxu0 0.0
    %155 = vmatprep.subr.mxu0 0.0
    %156 = vmatpush2.msra.mxu0 0.0
    %157 = vmatprep.subr.mxu0 0.0
    %158 = vmatpush2.msra.mxu0 0.0
    %159 = vmatprep.subr.mxu0 0.0
    %160 = vmatpush2.msra.mxu0 0.0
    %161 = vmatprep.subr.mxu0 0.0
    %162 = vmatpush2.msra.mxu0 0.0
    %163 = vmatprep.subr.mxu0 0.0
    %164 = vmatpush2.msra.mxu0 0.0
    %165 = vmatprep.mubr.f32.mxu0 0.0
    %166 = vmatmul.mubr.f32.gmra.mxu0 %v54
    %v167 = vpop.f32.mrf.mxu0
    %v168 = vadd.f32 0.0, %v167
    %v169 = vpop.f32.mrf.mxu0
    %170 = vmatprep.mubr.f32.mxu0 0.0
    %171 = vmatmul.mubr.f32.gmra.mxu0 %v57
    %v172 = vpop.f32.mrf.mxu0
    %v173 = vadd.f32 0.0, %v172
    %v174 = vpop.f32.mrf.mxu0
    %175 = vmatprep.mubr.f32.mxu0 0.0
    %176 = vmatmul.mubr.f32.gmra.mxu0 %v60
    %v177 = vpop.f32.mrf.mxu0
    %v178 = vadd.f32 0.0, %v177
    %v179 = vpop.f32.mrf.mxu0
    %180 = vmatprep.mubr.f32.mxu0 0.0
    %181 = vmatmul.mubr.f32.gmra.mxu0 %v63
    %v182 = vpop.f32.mrf.mxu0
    %v183 = vadd.f32 0.0, %v182
    %v184 = vpop.f32.mrf.mxu0
    %185 = vmatprep.mubr.f32.mxu0 0.0
    %186 = vmatmul.mubr.f32.gmra.mxu0 %v66
    %v187 = vpop.f32.mrf.mxu0
    %v188 = vadd.f32 0.0, %v187
    %v189 = vpop.f32.mrf.mxu0
    %190 = vmatprep.mubr.f32.mxu0 0.0
    %191 = vmatmul.mubr.f32.gmra.mxu0 %v69
    %v192 = vpop.f32.mrf.mxu0
    %v193 = vadd.f32 0.0, %v192
    %v194 = vpop.f32.mrf.mxu0
    %195 = vmatprep.mubr.f32.mxu0 0.0
    %196 = vmatmul.mubr.f32.gmra.mxu0 %v72
    %v197 = vpop.f32.mrf.mxu0
    %v198 = vadd.f32 0.0, %v197
    %v199 = vpop.f32.mrf.mxu0
    %200 = vmatprep.mubr.f32.mxu0 0.0
    %201 = vmatmul.mubr.f32.gmra.mxu0 %v75
    %v202 = vpop.f32.mrf.mxu0
    %v203 = vadd.f32 0.0, %v202
    %v204 = vpop.f32.mrf.mxu0
    %205 = vmatprep.mubr.f32.mxu0 0.0
    %206 = vmatmul.mubr.f32.gmra.mxu0 %v78
    %v207 = vpop.f32.mrf.mxu0
    %v208 = vadd.f32 0.0, %v207
    %v209 = vpop.f32.mrf.mxu0
    %210 = vmatprep.mubr.f32.mxu0 0.0
    %211 = vmatmul.mubr.f32.gmra.mxu0 %v81
    %v212 = vpop.f32.mrf.mxu0
    %v213 = vadd.f32 0.0, %v212
    %v214 = vpop.f32.mrf.mxu0
    %215 = vmatprep.mubr.f32.mxu0 0.0
    %216 = vmatmul.mubr.f32.gmra.mxu0 %v84
    %v217 = vpop.f32.mrf.mxu0
    %v218 = vadd.f32 0.0, %v217
    %v219 = vpop.f32.mrf.mxu0
    %220 = vmatprep.mubr.f32.mxu0 0.0
    %221 = vmatmul.mubr.f32.gmra.mxu0 %v87
    %v222 = vpop.f32.mrf.mxu0
    %v223 = vadd.f32 0.0, %v222
    %v224 = vpop.f32.mrf.mxu0
    %225 = vmatprep.mubr.f32.mxu0 0.0
    %226 = vmatmul.mubr.f32.gmra.mxu0 %v90
    %v227 = vpop.f32.mrf.mxu0
    %v228 = vadd.f32 0.0, %v227
    %v229 = vpop.f32.mrf.mxu0
    %230 = vmatprep.mubr.f32.mxu0 0.0
    %231 = vmatmul.mubr.f32.gmra.mxu0 %v93
    %v232 = vpop.f32.mrf.mxu0
    %v233 = vadd.f32 0.0, %v232
    %v234 = vpop.f32.mrf.mxu0
    %235 = vmatprep.mubr.f32.mxu0 0.0
    %236 = vmatmul.mubr.f32.gmra.mxu0 %v96
    %v237 = vpop.f32.mrf.mxu0
    %v238 = vadd.f32 0.0, %v237
    %v239 = vpop.f32.mrf.mxu0
    %240 = vmatprep.mubr.f32.mxu0 0.0
    %241 = vmatmul.mubr.f32.gmra.mxu0 %v99
    %v242 = vpop.f32.mrf.mxu0
    %v243 = vadd.f32 0.0, %v242
    %v244 = vpop.f32.mrf.mxu0
    %245 = vdwg.mxu0
    %246 = vmatprep.subr.mxu0 0.0
    %247 = vmatpush1.msra.mxu0 0.0
    %248 = vmatprep.subr.mxu0 0.0
    %249 = vmatpush1.msra.mxu0 0.0
    %250 = vmatprep.subr.mxu0 0.0
    %251 = vmatpush1.msra.mxu0 0.0
    %252 = vmatprep.subr.mxu0 0.0
    %253 = vmatpush1.msra.mxu0 0.0
    %254 = vmatprep.subr.mxu0 0.0
    %255 = vmatpush1.msra.mxu0 0.0
    %256 = vmatprep.subr.mxu0 0.0
    %257 = vmatpush1.msra.mxu0 0.0
    %258 = vmatprep.subr.mxu0 0.0
    %259 = vmatpush1.msra.mxu0 0.0
    %260 = vmatprep.subr.mxu0 0.0
    %261 = vmatpush1.msra.mxu0 0.0
    %262 = vmatprep.subr.mxu0 0.0
    %263 = vmatpush1.msra.mxu0 0.0
    %264 = vmatprep.subr.mxu0 0.0
    %265 = vmatpush1.msra.mxu0 0.0
    %266 = vmatprep.subr.mxu0 0.0
    %267 = vmatpush1.msra.mxu0 0.0
    %268 = vmatprep.subr.mxu0 0.0
    %269 = vmatpush1.msra.mxu0 %v51
    %270 = vmatprep.subr.mxu0 0.0
    %271 = vmatpush1.msra.mxu0 %v50
    %272 = vmatprep.subr.mxu0 0.0
    %273 = vmatpush1.msra.mxu0 %v49
    %274 = vmatprep.subr.mxu0 0.0
    %275 = vmatpush1.msra.mxu0 %v48
    %276 = vmatprep.subr.mxu0 0.0
    %277 = vmatpush1.msra.mxu0 %v47
    %278 = vmatprep.subr.mxu0 0.0
    %279 = vmatpush2.msra.mxu0 0.0
    %280 = vmatprep.subr.mxu0 0.0
    %281 = vmatpush2.msra.mxu0 0.0
    %282 = vmatprep.subr.mxu0 0.0
    %283 = vmatpush2.msra.mxu0 0.0
    %284 = vmatprep.subr.mxu0 0.0
    %285 = vmatpush2.msra.mxu0 0.0
    %286 = vmatprep.subr.mxu0 0.0
    %287 = vmatpush2.msra.mxu0 0.0
    %288 = vmatprep.subr.mxu0 0.0
    %289 = vmatpush2.msra.mxu0 0.0
    %290 = vmatprep.subr.mxu0 0.0
    %291 = vmatpush2.msra.mxu0 0.0
    %292 = vmatprep.subr.mxu0 0.0
    %293 = vmatpush2.msra.mxu0 0.0
    %294 = vmatprep.subr.mxu0 0.0
    %295 = vmatpush2.msra.mxu0 0.0
    %296 = vmatprep.subr.mxu0 0.0
    %297 = vmatpush2.msra.mxu0 0.0
    %298 = vmatprep.subr.mxu0 0.0
    %299 = vmatpush2.msra.mxu0 0.0
    %300 = vmatprep.subr.mxu0 0.0
    %301 = vmatpush2.msra.mxu0 0.0
    %302 = vmatprep.subr.mxu0 0.0
    %303 = vmatpush2.msra.mxu0 0.0
    %304 = vmatprep.subr.mxu0 0.0
    %305 = vmatpush2.msra.mxu0 0.0
    %306 = vmatprep.subr.mxu0 0.0
    %307 = vmatpush2.msra.mxu0 0.0
    %308 = vmatprep.subr.mxu0 0.0
    %309 = vmatpush2.msra.mxu0 0.0
    %310 = vmatprep.mubr.f32.mxu0 0.0
    %311 = vmatmul.mubr.f32.gmra.mxu0 %v54
    %v312 = vpop.f32.mrf.mxu0
    %v313 = vadd.f32 0.0, %v312
    %v314 = vpop.f32.mrf.mxu0
    %315 = vmatprep.mubr.f32.mxu0 0.0
    %316 = vmatmul.mubr.f32.gmra.mxu0 %v57
    %v317 = vpop.f32.mrf.mxu0
    %v318 = vadd.f32 0.0, %v317
    %v319 = vpop.f32.mrf.mxu0
    %320 = vmatprep.mubr.f32.mxu0 0.0
    %321 = vmatmul.mubr.f32.gmra.mxu0 %v60
    %v322 = vpop.f32.mrf.mxu0
    %v323 = vadd.f32 0.0, %v322
    %v324 = vpop.f32.mrf.mxu0
    %325 = vmatprep.mubr.f32.mxu0 0.0
    %326 = vmatmul.mubr.f32.gmra.mxu0 %v63
    %v327 = vpop.f32.mrf.mxu0
    %v328 = vadd.f32 0.0, %v327
    %v329 = vpop.f32.mrf.mxu0
    %330 = vmatprep.mubr.f32.mxu0 0.0
    %331 = vmatmul.mubr.f32.gmra.mxu0 %v66
    %v332 = vpop.f32.mrf.mxu0
    %v333 = vadd.f32 0.0, %v332
    %v334 = vpop.f32.mrf.mxu0
    %335 = vmatprep.mubr.f32.mxu0 0.0
    %336 = vmatmul.mubr.f32.gmra.mxu0 %v69
    %v337 = vpop.f32.mrf.mxu0
    %v338 = vadd.f32 0.0, %v337
    %v339 = vpop.f32.mrf.mxu0
    %340 = vmatprep.mubr.f32.mxu0 0.0
    %341 = vmatmul.mubr.f32.gmra.mxu0 %v72
    %v342 = vpop.f32.mrf.mxu0
    %v343 = vadd.f32 0.0, %v342
    %v344 = vpop.f32.mrf.mxu0
    %345 = vmatprep.mubr.f32.mxu0 0.0
    %346 = vmatmul.mubr.f32.gmra.mxu0 %v75
    %v347 = vpop.f32.mrf.mxu0
    %v348 = vadd.f32 0.0, %v347
    %v349 = vpop.f32.mrf.mxu0
    %350 = vmatprep.mubr.f32.mxu0 0.0
    %351 = vmatmul.mubr.f32.gmra.mxu0 %v78
    %v352 = vpop.f32.mrf.mxu0
    %v353 = vadd.f32 0.0, %v352
    %v354 = vpop.f32.mrf.mxu0
    %355 = vmatprep.mubr.f32.mxu0 0.0
    %356 = vmatmul.mubr.f32.gmra.mxu0 %v81
    %v357 = vpop.f32.mrf.mxu0
    %v358 = vadd.f32 0.0, %v357
    %v359 = vpop.f32.mrf.mxu0
    %360 = vmatprep.mubr.f32.mxu0 0.0
    %361 = vmatmul.mubr.f32.gmra.mxu0 %v84
    %v362 = vpop.f32.mrf.mxu0
    %v363 = vadd.f32 0.0, %v362
    %v364 = vpop.f32.mrf.mxu0
    %365 = vmatprep.mubr.f32.mxu0 0.0
    %366 = vmatmul.mubr.f32.gmra.mxu0 %v87
    %v367 = vpop.f32.mrf.mxu0
    %v368 = vadd.f32 0.0, %v367
    %v369 = vpop.f32.mrf.mxu0
    %370 = vmatprep.mubr.f32.mxu0 0.0
    %371 = vmatmul.mubr.f32.gmra.mxu0 %v90
    %v372 = vpop.f32.mrf.mxu0
    %v373 = vadd.f32 0.0, %v372
    %v374 = vpop.f32.mrf.mxu0
    %375 = vmatprep.mubr.f32.mxu0 0.0
    %376 = vmatmul.mubr.f32.gmra.mxu0 %v93
    %v377 = vpop.f32.mrf.mxu0
    %v378 = vadd.f32 0.0, %v377
    %v379 = vpop.f32.mrf.mxu0
    %380 = vmatprep.mubr.f32.mxu0 0.0
    %381 = vmatmul.mubr.f32.gmra.mxu0 %v96
    %v382 = vpop.f32.mrf.mxu0
    %v383 = vadd.f32 0.0, %v382
    %v384 = vpop.f32.mrf.mxu0
    %385 = vmatprep.mubr.f32.mxu0 0.0
    %386 = vmatmul.mubr.f32.gmra.mxu0 %v99
    %v387 = vpop.f32.mrf.mxu0
    %v388 = vadd.f32 0.0, %v387
    %v389 = vpop.f32.mrf.mxu0
    %390 = vdwg.mxu0
    %v391 = vld [vmem:[#allocation2 + $0x50] sm:$0x1]
    %v392 = vmax.f32 %v168, %v313
    %v393 = vmax.f32 %v173, %v318
    %v394 = vmax.f32 %v178, %v323
    %v395 = vmax.f32 %v183, %v328
    %v396 = vmax.f32 %v188, %v333
    %v397 = vmax.f32 %v193, %v338
    %v398 = vmax.f32 %v198, %v343
    %v399 = vmax.f32 %v203, %v348
    %v400 = vmax.f32 %v208, %v353
    %v401 = vmax.f32 %v213, %v358
    %v402 = vmax.f32 %v218, %v363
    %v403 = vmax.f32 %v223, %v368
    %v404 = vmax.f32 %v228, %v373
    %v405 = vmax.f32 %v233, %v378
    %v406 = vmax.f32 %v238, %v383
    %v407 = vmax.f32 %v243, %v388
    %v408 = vlaneseq
    %v409 = vshrl.u32 %v408, 7
    %v410 = vsub.s32 0, %v409
    %v411 = vrot.slane %v391, %v410
    %v412 = vadd.f32 %v392, %v411
    %v413 = vadd.f32 %v393, %v411
    %v414 = vadd.f32 %v394, %v411
    %v415 = vadd.f32 %v395, %v411
    %v416 = vadd.f32 %v396, %v411
    %v417 = vadd.f32 %v397, %v411
    %v418 = vadd.f32 %v398, %v411
    %v419 = vadd.f32 %v399, %v411
    %v420 = vadd.f32 %v400, %v411
    %v421 = vadd.f32 %v401, %v411
    %v422 = vadd.f32 %v402, %v411
    %v423 = vadd.f32 %v403, %v411
    %v424 = vadd.f32 %v404, %v411
    %v425 = vadd.f32 %v405, %v411
    %v426 = vadd.f32 %v406, %v411
    %v427 = vadd.f32 %v407, %v411
    %v428 = vmax.f32 %v412, 0.0
    %v429 = vmax.f32 %v413, 0.0
    %v430 = vmax.f32 %v414, 0.0
    %v431 = vmax.f32 %v415, 0.0
    %v432 = vmax.f32 %v416, 0.0
    %v433 = vmax.f32 %v417, 0.0
    %v434 = vmax.f32 %v418, 0.0
    %v435 = vmax.f32 %v419, 0.0
    %v436 = vmax.f32 %v420, 0.0
    %v437 = vmax.f32 %v421, 0.0
    %v438 = vmax.f32 %v422, 0.0
    %v439 = vmax.f32 %v423, 0.0
    %v440 = vmax.f32 %v424, 0.0
    %v441 = vmax.f32 %v425, 0.0
    %v442 = vmax.f32 %v426, 0.0
    %v443 = vmax.f32 %v427, 0.0
    %v444 = vld [vmem:[#allocation2 + $0x58] sm:$0xff]
    %v445 = vld [vmem:[#allocation2 + $0x60] sm:$0xff]
    %v446 = vld [vmem:[#allocation2 + $0x68] sm:$0xff]
    %v447 = vld [vmem:[#allocation2 + $0x70] sm:$0xff]
    %v448 = vld [vmem:[#allocation2 + $0x78] sm:$0xff]
    %v449 = vld [vmem:[#allocation2 + $0x80] sm:$0xff]
    %v450 = vld [vmem:[#allocation2 + $0x88] sm:$0xff]
    %v451 = vld [vmem:[#allocation2 + $0x90] sm:$0xff]
    %v452 = vld [vmem:[#allocation2 + $0x98] sm:$0xff]
    %v453 = vld [vmem:[#allocation2 + $0xa0] sm:$0xff]
    %v454 = vld [vmem:[#allocation2 + $0xa8] sm:$0xff]
    %v455 = vld [vmem:[#allocation2 + $0xb0] sm:$0xff]
    %v456 = vld [vmem:[#allocation2 + $0xb8] sm:$0xff]
    %v457 = vld [vmem:[#allocation2 + $0xc0] sm:$0xff]
    %v458 = vld [vmem:[#allocation2 + $0xc8] sm:$0xff]
    %v459 = vld [vmem:[#allocation2 + $0xd0] sm:$0xff]
    %v460 = vld [vmem:[#allocation2 + $0xd8] sm:$0x1]
    %v461 = vlaneseq
    %v462 = vshrl.u32 %v461, 7
    %v463 = vsub.s32 0, %v462
    %v464 = vrot.slane %v460, %v463
    %465 = vmatprep.subr.mxu0 0.0
    %466 = vmatpush1.msra.mxu0 %v459
    %467 = vmatprep.subr.mxu0 0.0
    %468 = vmatpush1.msra.mxu0 %v458
    %469 = vmatprep.subr.mxu0 0.0
    %470 = vmatpush1.msra.mxu0 %v457
    %471 = vmatprep.subr.mxu0 0.0
    %472 = vmatpush1.msra.mxu0 %v456
    %473 = vmatprep.subr.mxu0 0.0
    %474 = vmatpush1.msra.mxu0 %v455
    %475 = vmatprep.subr.mxu0 0.0
    %476 = vmatpush1.msra.mxu0 %v454
    %477 = vmatprep.subr.mxu0 0.0
    %478 = vmatpush1.msra.mxu0 %v453
    %479 = vmatprep.subr.mxu0 0.0
    %480 = vmatpush1.msra.mxu0 %v452
    %481 = vmatprep.subr.mxu0 0.0
    %482 = vmatpush1.msra.mxu0 %v451
    %483 = vmatprep.subr.mxu0 0.0
    %484 = vmatpush1.msra.mxu0 %v450
    %485 = vmatprep.subr.mxu0 0.0
    %486 = vmatpush1.msra.mxu0 %v449
    %487 = vmatprep.subr.mxu0 0.0
    %488 = vmatpush1.msra.mxu0 %v448
    %489 = vmatprep.subr.mxu0 0.0
    %490 = vmatpush1.msra.mxu0 %v447
    %491 = vmatprep.subr.mxu0 0.0
    %492 = vmatpush1.msra.mxu0 %v446
    %493 = vmatprep.subr.mxu0 0.0
    %494 = vmatpush1.msra.mxu0 %v445
    %495 = vmatprep.subr.mxu0 0.0
    %496 = vmatpush1.msra.mxu0 %v444
    %497 = vmatprep.subr.mxu0 0.0
    %498 = vmatpush2.msra.mxu0 0.0
    %499 = vmatprep.subr.mxu0 0.0
    %500 = vmatpush2.msra.mxu0 0.0
    %501 = vmatprep.subr.mxu0 0.0
    %502 = vmatpush2.msra.mxu0 0.0
    %503 = vmatprep.subr.mxu0 0.0
    %504 = vmatpush2.msra.mxu0 0.0
    %505 = vmatprep.subr.mxu0 0.0
    %506 = vmatpush2.msra.mxu0 0.0
    %507 = vmatprep.subr.mxu0 0.0
    %508 = vmatpush2.msra.mxu0 0.0
    %509 = vmatprep.subr.mxu0 0.0
    %510 = vmatpush2.msra.mxu0 0.0
    %511 = vmatprep.subr.mxu0 0.0
    %512 = vmatpush2.msra.mxu0 0.0
    %513 = vmatprep.subr.mxu0 0.0
    %514 = vmatpush2.msra.mxu0 0.0
    %515 = vmatprep.subr.mxu0 0.0
    %516 = vmatpush2.msra.mxu0 0.0
    %517 = vmatprep.subr.mxu0 0.0
    %518 = vmatpush2.msra.mxu0 0.0
    %519 = vmatprep.subr.mxu0 0.0
    %520 = vmatpush2.msra.mxu0 0.0
    %521 = vmatprep.subr.mxu0 0.0
    %522 = vmatpush2.msra.mxu0 0.0
    %523 = vmatprep.subr.mxu0 0.0
    %524 = vmatpush2.msra.mxu0 0.0
    %525 = vmatprep.subr.mxu0 0.0
    %526 = vmatpush2.msra.mxu0 0.0
    %527 = vmatprep.subr.mxu0 0.0
    %528 = vmatpush2.msra.mxu0 0.0
    %529 = vmatprep.mubr.f32.mxu0 0.0
    %530 = vmatmul.mubr.f32.gmra.mxu0 %v428
    %v531 = vpop.f32.mrf.mxu0
    %v532 = vadd.f32 %v464, %v531
    %v533 = vpop.f32.mrf.mxu0
    %534 = vmatprep.mubr.f32.mxu0 0.0
    %535 = vmatmul.mubr.f32.gmra.mxu0 %v429
    %v536 = vpop.f32.mrf.mxu0
    %v537 = vadd.f32 %v464, %v536
    %v538 = vpop.f32.mrf.mxu0
    %539 = vmatprep.mubr.f32.mxu0 0.0
    %540 = vmatmul.mubr.f32.gmra.mxu0 %v430
    %v541 = vpop.f32.mrf.mxu0
    %v542 = vadd.f32 %v464, %v541
    %v543 = vpop.f32.mrf.mxu0
    %544 = vmatprep.mubr.f32.mxu0 0.0
    %545 = vmatmul.mubr.f32.gmra.mxu0 %v431
    %v546 = vpop.f32.mrf.mxu0
    %v547 = vadd.f32 %v464, %v546
    %v548 = vpop.f32.mrf.mxu0
    %549 = vmatprep.mubr.f32.mxu0 0.0
    %550 = vmatmul.mubr.f32.gmra.mxu0 %v432
    %v551 = vpop.f32.mrf.mxu0
    %v552 = vadd.f32 %v464, %v551
    %v553 = vpop.f32.mrf.mxu0
    %554 = vmatprep.mubr.f32.mxu0 0.0
    %555 = vmatmul.mubr.f32.gmra.mxu0 %v433
    %v556 = vpop.f32.mrf.mxu0
    %v557 = vadd.f32 %v464, %v556
    %v558 = vpop.f32.mrf.mxu0
    %559 = vmatprep.mubr.f32.mxu0 0.0
    %560 = vmatmul.mubr.f32.gmra.mxu0 %v434
    %v561 = vpop.f32.mrf.mxu0
    %v562 = vadd.f32 %v464, %v561
    %v563 = vpop.f32.mrf.mxu0
    %564 = vmatprep.mubr.f32.mxu0 0.0
    %565 = vmatmul.mubr.f32.gmra.mxu0 %v435
    %v566 = vpop.f32.mrf.mxu0
    %v567 = vadd.f32 %v464, %v566
    %v568 = vpop.f32.mrf.mxu0
    %569 = vmatprep.mubr.f32.mxu0 0.0
    %570 = vmatmul.mubr.f32.gmra.mxu0 %v436
    %v571 = vpop.f32.mrf.mxu0
    %v572 = vadd.f32 %v464, %v571
    %v573 = vpop.f32.mrf.mxu0
    %574 = vmatprep.mubr.f32.mxu0 0.0
    %575 = vmatmul.mubr.f32.gmra.mxu0 %v437
    %v576 = vpop.f32.mrf.mxu0
    %v577 = vadd.f32 %v464, %v576
    %v578 = vpop.f32.mrf.mxu0
    %579 = vmatprep.mubr.f32.mxu0 0.0
    %580 = vmatmul.mubr.f32.gmra.mxu0 %v438
    %v581 = vpop.f32.mrf.mxu0
    %v582 = vadd.f32 %v464, %v581
    %v583 = vpop.f32.mrf.mxu0
    %584 = vmatprep.mubr.f32.mxu0 0.0
    %585 = vmatmul.mubr.f32.gmra.mxu0 %v439
    %v586 = vpop.f32.mrf.mxu0
    %v587 = vadd.f32 %v464, %v586
    %v588 = vpop.f32.mrf.mxu0
    %589 = vmatprep.mubr.f32.mxu0 0.0
    %590 = vmatmul.mubr.f32.gmra.mxu0 %v440
    %v591 = vpop.f32.mrf.mxu0
    %v592 = vadd.f32 %v464, %v591
    %v593 = vpop.f32.mrf.mxu0
    %594 = vmatprep.mubr.f32.mxu0 0.0
    %595 = vmatmul.mubr.f32.gmra.mxu0 %v441
    %v596 = vpop.f32.mrf.mxu0
    %v597 = vadd.f32 %v464, %v596
    %v598 = vpop.f32.mrf.mxu0
    %599 = vmatprep.mubr.f32.mxu0 0.0
    %600 = vmatmul.mubr.f32.gmra.mxu0 %v442
    %v601 = vpop.f32.mrf.mxu0
    %v602 = vadd.f32 %v464, %v601
    %v603 = vpop.f32.mrf.mxu0
    %604 = vmatprep.mubr.f32.mxu0 0.0
    %605 = vmatmul.mubr.f32.gmra.mxu0 %v443
    %v606 = vpop.f32.mrf.mxu0
    %v607 = vadd.f32 %v464, %v606
    %v608 = vpop.f32.mrf.mxu0
    %609 = vdwg.mxu0
    %v610 = vmax.f32 %v532, 0.0
    %v611 = vmax.f32 %v537, 0.0
    %v612 = vmax.f32 %v542, 0.0
    %v613 = vmax.f32 %v547, 0.0
    %v614 = vmax.f32 %v552, 0.0
    %v615 = vmax.f32 %v557, 0.0
    %v616 = vmax.f32 %v562, 0.0
    %v617 = vmax.f32 %v567, 0.0
    %v618 = vmax.f32 %v572, 0.0
    %v619 = vmax.f32 %v577, 0.0
    %v620 = vmax.f32 %v582, 0.0
    %v621 = vmax.f32 %v587, 0.0
    %v622 = vmax.f32 %v592, 0.0
    %v623 = vmax.f32 %v597, 0.0
    %v624 = vmax.f32 %v602, 0.0
    %v625 = vmax.f32 %v607, 0.0
    %v626 = vld [vmem:[#allocation2 + $0xe0] sm:$0xff]
    %v627 = vld [vmem:[#allocation2 + $0xe8] sm:$0xff]
    %v628 = vld [vmem:[#allocation2 + $0xf0] sm:$0xff]
    %v629 = vld [vmem:[#allocation2 + $0xf8] sm:$0xff]
    %v630 = vld [vmem:[#allocation2 + $0x100] sm:$0xff]
    %v631 = vld [vmem:[#allocation2 + $0x108] sm:$0xff]
    %v632 = vld [vmem:[#allocation2 + $0x110] sm:$0xff]
    %v633 = vld [vmem:[#allocation2 + $0x118] sm:$0xff]
    %v634 = vld [vmem:[#allocation2 + $0x120] sm:$0xff]
    %v635 = vld [vmem:[#allocation2 + $0x128] sm:$0xff]
    %v636 = vld [vmem:[#allocation2 + $0x130] sm:$0xff]
    %v637 = vld [vmem:[#allocation2 + $0x138] sm:$0xff]
    %v638 = vld [vmem:[#allocation2 + $0x140] sm:$0xff]
    %v639 = vld [vmem:[#allocation2 + $0x148] sm:$0xff]
    %v640 = vld [vmem:[#allocation2 + $0x150] sm:$0xff]
    %v641 = vld [vmem:[#allocation2 + $0x158] sm:$0xff]
    %v642 = vld [vmem:[#allocation2 + $0x160] sm:$0x1]
    %v643 = vlaneseq
    %v644 = vshrl.u32 %v643, 7
    %v645 = vsub.s32 0, %v644
    %v646 = vrot.slane %v642, %v645
    %647 = vmatprep.subr.mxu0 0.0
    %648 = vmatpush1.msra.mxu0 %v641
    %649 = vmatprep.subr.mxu0 0.0
    %650 = vmatpush1.msra.mxu0 %v640
    %651 = vmatprep.subr.mxu0 0.0
    %652 = vmatpush1.msra.mxu0 %v639
    %653 = vmatprep.subr.mxu0 0.0
    %654 = vmatpush1.msra.mxu0 %v638
    %655 = vmatprep.subr.mxu0 0.0
    %656 = vmatpush1.msra.mxu0 %v637
    %657 = vmatprep.subr.mxu0 0.0
    %658 = vmatpush1.msra.mxu0 %v636
    %659 = vmatprep.subr.mxu0 0.0
    %660 = vmatpush1.msra.mxu0 %v635
    %661 = vmatprep.subr.mxu0 0.0
    %662 = vmatpush1.msra.mxu0 %v634
    %663 = vmatprep.subr.mxu0 0.0
    %664 = vmatpush1.msra.mxu0 %v633
    %665 = vmatprep.subr.mxu0 0.0
    %666 = vmatpush1.msra.mxu0 %v632
    %667 = vmatprep.subr.mxu0 0.0
    %668 = vmatpush1.msra.mxu0 %v631
    %669 = vmatprep.subr.mxu0 0.0
    %670 = vmatpush1.msra.mxu0 %v630
    %671 = vmatprep.subr.mxu0 0.0
    %672 = vmatpush1.msra.mxu0 %v629
    %673 = vmatprep.subr.mxu0 0.0
    %674 = vmatpush1.msra.mxu0 %v628
    %675 = vmatprep.subr.mxu0 0.0
    %676 = vmatpush1.msra.mxu0 %v627
    %677 = vmatprep.subr.mxu0 0.0
    %678 = vmatpush1.msra.mxu0 %v626
    %679 = vmatprep.subr.mxu0 0.0
    %680 = vmatpush2.msra.mxu0 0.0
    %681 = vmatprep.subr.mxu0 0.0
    %682 = vmatpush2.msra.mxu0 0.0
    %683 = vmatprep.subr.mxu0 0.0
    %684 = vmatpush2.msra.mxu0 0.0
    %685 = vmatprep.subr.mxu0 0.0
    %686 = vmatpush2.msra.mxu0 0.0
    %687 = vmatprep.subr.mxu0 0.0
    %688 = vmatpush2.msra.mxu0 0.0
    %689 = vmatprep.subr.mxu0 0.0
    %690 = vmatpush2.msra.mxu0 0.0
    %691 = vmatprep.subr.mxu0 0.0
    %692 = vmatpush2.msra.mxu0 0.0
    %693 = vmatprep.subr.mxu0 0.0
    %694 = vmatpush2.msra.mxu0 0.0
    %695 = vmatprep.subr.mxu0 0.0
    %696 = vmatpush2.msra.mxu0 0.0
    %697 = vmatprep.subr.mxu0 0.0
    %698 = vmatpush2.msra.mxu0 0.0
    %699 = vmatprep.subr.mxu0 0.0
    %700 = vmatpush2.msra.mxu0 0.0
    %701 = vmatprep.subr.mxu0 0.0
    %702 = vmatpush2.msra.mxu0 0.0
    %703 = vmatprep.subr.mxu0 0.0
    %704 = vmatpush2.msra.mxu0 0.0
    %705 = vmatprep.subr.mxu0 0.0
    %706 = vmatpush2.msra.mxu0 0.0
    %707 = vmatprep.subr.mxu0 0.0
    %708 = vmatpush2.msra.mxu0 0.0
    %709 = vmatprep.subr.mxu0 0.0
    %710 = vmatpush2.msra.mxu0 0.0
    %711 = vmatprep.mubr.f32.mxu0 0.0
    %712 = vmatmul.mubr.f32.gmra.mxu0 %v610
    %v713 = vpop.f32.mrf.mxu0
    %v714 = vadd.f32 %v646, %v713
    %v715 = vpop.f32.mrf.mxu0
    %716 = vmatprep.mubr.f32.mxu0 0.0
    %717 = vmatmul.mubr.f32.gmra.mxu0 %v611
    %v718 = vpop.f32.mrf.mxu0
    %v719 = vadd.f32 %v646, %v718
    %v720 = vpop.f32.mrf.mxu0
    %721 = vmatprep.mubr.f32.mxu0 0.0
    %722 = vmatmul.mubr.f32.gmra.mxu0 %v612
    %v723 = vpop.f32.mrf.mxu0
    %v724 = vadd.f32 %v646, %v723
    %v725 = vpop.f32.mrf.mxu0
    %726 = vmatprep.mubr.f32.mxu0 0.0
    %727 = vmatmul.mubr.f32.gmra.mxu0 %v613
    %v728 = vpop.f32.mrf.mxu0
    %v729 = vadd.f32 %v646, %v728
    %v730 = vpop.f32.mrf.mxu0
    %731 = vmatprep.mubr.f32.mxu0 0.0
    %732 = vmatmul.mubr.f32.gmra.mxu0 %v614
    %v733 = vpop.f32.mrf.mxu0
    %v734 = vadd.f32 %v646, %v733
    %v735 = vpop.f32.mrf.mxu0
    %736 = vmatprep.mubr.f32.mxu0 0.0
    %737 = vmatmul.mubr.f32.gmra.mxu0 %v615
    %v738 = vpop.f32.mrf.mxu0
    %v739 = vadd.f32 %v646, %v738
    %v740 = vpop.f32.mrf.mxu0
    %741 = vmatprep.mubr.f32.mxu0 0.0
    %742 = vmatmul.mubr.f32.gmra.mxu0 %v616
    %v743 = vpop.f32.mrf.mxu0
    %v744 = vadd.f32 %v646, %v743
    %v745 = vpop.f32.mrf.mxu0
    %746 = vmatprep.mubr.f32.mxu0 0.0
    %747 = vmatmul.mubr.f32.gmra.mxu0 %v617
    %v748 = vpop.f32.mrf.mxu0
    %v749 = vadd.f32 %v646, %v748
    %v750 = vpop.f32.mrf.mxu0
    %751 = vmatprep.mubr.f32.mxu0 0.0
    %752 = vmatmul.mubr.f32.gmra.mxu0 %v618
    %v753 = vpop.f32.mrf.mxu0
    %v754 = vadd.f32 %v646, %v753
    %v755 = vpop.f32.mrf.mxu0
    %756 = vmatprep.mubr.f32.mxu0 0.0
    %757 = vmatmul.mubr.f32.gmra.mxu0 %v619
    %v758 = vpop.f32.mrf.mxu0
    %v759 = vadd.f32 %v646, %v758
    %v760 = vpop.f32.mrf.mxu0
    %761 = vmatprep.mubr.f32.mxu0 0.0
    %762 = vmatmul.mubr.f32.gmra.mxu0 %v620
    %v763 = vpop.f32.mrf.mxu0
    %v764 = vadd.f32 %v646, %v763
    %v765 = vpop.f32.mrf.mxu0
    %766 = vmatprep.mubr.f32.mxu0 0.0
    %767 = vmatmul.mubr.f32.gmra.mxu0 %v621
    %v768 = vpop.f32.mrf.mxu0
    %v769 = vadd.f32 %v646, %v768
    %v770 = vpop.f32.mrf.mxu0
    %771 = vmatprep.mubr.f32.mxu0 0.0
    %772 = vmatmul.mubr.f32.gmra.mxu0 %v622
    %v773 = vpop.f32.mrf.mxu0
    %v774 = vadd.f32 %v646, %v773
    %v775 = vpop.f32.mrf.mxu0
    %776 = vmatprep.mubr.f32.mxu0 0.0
    %777 = vmatmul.mubr.f32.gmra.mxu0 %v623
    %v778 = vpop.f32.mrf.mxu0
    %v779 = vadd.f32 %v646, %v778
    %v780 = vpop.f32.mrf.mxu0
    %781 = vmatprep.mubr.f32.mxu0 0.0
    %782 = vmatmul.mubr.f32.gmra.mxu0 %v624
    %v783 = vpop.f32.mrf.mxu0
    %v784 = vadd.f32 %v646, %v783
    %v785 = vpop.f32.mrf.mxu0
    %786 = vmatprep.mubr.f32.mxu0 0.0
    %787 = vmatmul.mubr.f32.gmra.mxu0 %v625
    %v788 = vpop.f32.mrf.mxu0
    %v789 = vadd.f32 %v646, %v788
    %v790 = vpop.f32.mrf.mxu0
    %791 = vdwg.mxu0
    %v792 = vmax.f32 %v714, 0.0
    %v793 = vmax.f32 %v719, 0.0
    %v794 = vmax.f32 %v724, 0.0
    %v795 = vmax.f32 %v729, 0.0
    %v796 = vmax.f32 %v734, 0.0
    %v797 = vmax.f32 %v739, 0.0
    %v798 = vmax.f32 %v744, 0.0
    %v799 = vmax.f32 %v749, 0.0
    %v800 = vmax.f32 %v754, 0.0
    %v801 = vmax.f32 %v759, 0.0
    %v802 = vmax.f32 %v764, 0.0
    %v803 = vmax.f32 %v769, 0.0
    %v804 = vmax.f32 %v774, 0.0
    %v805 = vmax.f32 %v779, 0.0
    %v806 = vmax.f32 %v784, 0.0
    %v807 = vmax.f32 %v789, 0.0
    %v808 = vld [vmem:[#allocation2 + $0x168] sm:$0x1]
    %v809 = vld [vmem:[#allocation2 + $0x169] sm:$0x1]
    %v810 = vlaneseq
    %v811 = vshrl.u32 %v810, 7
    %v812 = vsub.s32 0, %v811
    %v813 = vrot.slane %v808, %v812
    %v814 = vmul.f32 %v792, %v813
    %v815 = vmul.f32 %v793, %v813
    %v816 = vmul.f32 %v794, %v813
    %v817 = vmul.f32 %v795, %v813
    %v818 = vmul.f32 %v796, %v813
    %v819 = vmul.f32 %v797, %v813
    %v820 = vmul.f32 %v798, %v813
    %v821 = vmul.f32 %v799, %v813
    %v822 = vmul.f32 %v800, %v813
    %v823 = vmul.f32 %v801, %v813
    %v824 = vmul.f32 %v802, %v813
    %v825 = vmul.f32 %v803, %v813
    %v826 = vmul.f32 %v804, %v813
    %v827 = vmul.f32 %v805, %v813
    %v828 = vmul.f32 %v806, %v813
    %v829 = vmul.f32 %v807, %v813
    %830 = vadd.xlane.f32.xlu0 %v814
    %v831 = vpop.xlane.xlu0 %830
    %832 = vadd.xlane.f32.xlu0 %v815
    %v833 = vpop.xlane.xlu0 %832
    %834 = vadd.xlane.f32.xlu0 %v816
    %v835 = vpop.xlane.xlu0 %834
    %836 = vadd.xlane.f32.xlu0 %v817
    %v837 = vpop.xlane.xlu0 %836
    %838 = vadd.xlane.f32.xlu0 %v818
    %v839 = vpop.xlane.xlu0 %838
    %840 = vadd.xlane.f32.xlu0 %v819
    %v841 = vpop.xlane.xlu0 %840
    %842 = vadd.xlane.f32.xlu0 %v820
    %v843 = vpop.xlane.xlu0 %842
    %844 = vadd.xlane.f32.xlu0 %v821
    %v845 = vpop.xlane.xlu0 %844
    %846 = vadd.xlane.f32.xlu0 %v822
    %v847 = vpop.xlane.xlu0 %846
    %848 = vadd.xlane.f32.xlu0 %v823
    %v849 = vpop.xlane.xlu0 %848
    %850 = vadd.xlane.f32.xlu0 %v824
    %v851 = vpop.xlane.xlu0 %850
    %852 = vadd.xlane.f32.xlu0 %v825
    %v853 = vpop.xlane.xlu0 %852
    %854 = vadd.xlane.f32.xlu0 %v826
    %v855 = vpop.xlane.xlu0 %854
    %856 = vadd.xlane.f32.xlu0 %v827
    %v857 = vpop.xlane.xlu0 %856
    %858 = vadd.xlane.f32.xlu0 %v828
    %v859 = vpop.xlane.xlu0 %858
    %860 = vadd.xlane.f32.xlu0 %v829
    %v861 = vpop.xlane.xlu0 %860
    %v863 = vlaneseq
    %v864 = vshrl.u32 %v863, 7
    %v865 = vsub.s32 0, %v864
    %v866 = vrot.slane %v809, %v865
    %868 = vbcast.lane.b32.xlu0 %v866, 256
    %v869 = vpop.permute.xlu0 %868
    %s871 = sor.u32 256, 8
    %872 = vbcast.lane.b32.xlu0 %v866, %s871
    %v873 = vpop.permute.xlu0 %872
    %s875 = sor.u32 256, 16
    %876 = vbcast.lane.b32.xlu0 %v866, %s875
    %v877 = vpop.permute.xlu0 %876
    %s879 = sor.u32 256, 24
    %880 = vbcast.lane.b32.xlu0 %v866, %s879
    %v881 = vpop.permute.xlu0 %880
    %s883 = sor.u32 256, 32
    %884 = vbcast.lane.b32.xlu0 %v866, %s883
    %v885 = vpop.permute.xlu0 %884
    %s887 = sor.u32 256, 40
    %888 = vbcast.lane.b32.xlu0 %v866, %s887
    %v889 = vpop.permute.xlu0 %888
    %s891 = sor.u32 256, 48
    %892 = vbcast.lane.b32.xlu0 %v866, %s891
    %v893 = vpop.permute.xlu0 %892
    %s895 = sor.u32 256, 56
    %896 = vbcast.lane.b32.xlu0 %v866, %s895
    %v897 = vpop.permute.xlu0 %896
    %s899 = sor.u32 256, 64
    %900 = vbcast.lane.b32.xlu0 %v866, %s899
    %v901 = vpop.permute.xlu0 %900
    %s903 = sor.u32 256, 72
    %904 = vbcast.lane.b32.xlu0 %v866, %s903
    %v905 = vpop.permute.xlu0 %904
    %s907 = sor.u32 256, 80
    %908 = vbcast.lane.b32.xlu0 %v866, %s907
    %v909 = vpop.permute.xlu0 %908
    %s911 = sor.u32 256, 88
    %912 = vbcast.lane.b32.xlu0 %v866, %s911
    %v913 = vpop.permute.xlu0 %912
    %s915 = sor.u32 256, 96
    %916 = vbcast.lane.b32.xlu0 %v866, %s915
    %v917 = vpop.permute.xlu0 %916
    %s919 = sor.u32 256, 104
    %920 = vbcast.lane.b32.xlu0 %v866, %s919
    %v921 = vpop.permute.xlu0 %920
    %s923 = sor.u32 256, 112
    %924 = vbcast.lane.b32.xlu0 %v866, %s923
    %v925 = vpop.permute.xlu0 %924
    %s927 = sor.u32 256, 120
    %928 = vbcast.lane.b32.xlu0 %v866, %s927
    %v929 = vpop.permute.xlu0 %928
    %v946 = vadd.f32 %v831, %v869
    %v947 = vadd.f32 %v833, %v873
    %v948 = vadd.f32 %v835, %v877
    %v949 = vadd.f32 %v837, %v881
    %v950 = vadd.f32 %v839, %v885
    %v951 = vadd.f32 %v841, %v889
    %v952 = vadd.f32 %v843, %v893
    %v953 = vadd.f32 %v845, %v897
    %v954 = vadd.f32 %v847, %v901
    %v955 = vadd.f32 %v849, %v905
    %v956 = vadd.f32 %v851, %v909
    %v957 = vadd.f32 %v853, %v913
    %v958 = vadd.f32 %v855, %v917
    %v959 = vadd.f32 %v857, %v921
    %v960 = vadd.f32 %v859, %v925
    %v961 = vadd.f32 %v861, %v929
    %v962 = vxor.u32 %v946, 2147483648
    %v963 = vxor.u32 %v947, 2147483648
    %v964 = vxor.u32 %v948, 2147483648
    %v965 = vxor.u32 %v949, 2147483648
    %v966 = vxor.u32 %v950, 2147483648
    %v967 = vxor.u32 %v951, 2147483648
    %v968 = vxor.u32 %v952, 2147483648
    %v969 = vxor.u32 %v953, 2147483648
    %v970 = vxor.u32 %v954, 2147483648
    %v971 = vxor.u32 %v955, 2147483648
    %v972 = vxor.u32 %v956, 2147483648
    %v973 = vxor.u32 %v957, 2147483648
    %v974 = vxor.u32 %v958, 2147483648
    %v975 = vxor.u32 %v959, 2147483648
    %v976 = vxor.u32 %v960, 2147483648
    %v977 = vxor.u32 %v961, 2147483648
    %v978 = vmul.f32 %v962, 1.442695
    %v979 = vpow.pop %v978
    %v980 = vmul.f32 %v963, 1.442695
    %v981 = vpow.pop %v980
    %v982 = vmul.f32 %v964, 1.442695
    %v983 = vpow.pop %v982
    %v984 = vmul.f32 %v965, 1.442695
    %v985 = vpow.pop %v984
    %v986 = vmul.f32 %v966, 1.442695
    %v987 = vpow.pop %v986
    %v988 = vmul.f32 %v967, 1.442695
    %v989 = vpow.pop %v988
    %v990 = vmul.f32 %v968, 1.442695
    %v991 = vpow.pop %v990
    %v992 = vmul.f32 %v969, 1.442695
    %v993 = vpow.pop %v992
    %v994 = vmul.f32 %v970, 1.442695
    %v995 = vpow.pop %v994
    %v996 = vmul.f32 %v971, 1.442695
    %v997 = vpow.pop %v996
    %v998 = vmul.f32 %v972, 1.442695
    %v999 = vpow.pop %v998
    %v1000 = vmul.f32 %v973, 1.442695
    %v1001 = vpow.pop %v1000
    %v1002 = vmul.f32 %v974, 1.442695
    %v1003 = vpow.pop %v1002
    %v1004 = vmul.f32 %v975, 1.442695
    %v1005 = vpow.pop %v1004
    %v1006 = vmul.f32 %v976, 1.442695
    %v1007 = vpow.pop %v1006
    %v1008 = vmul.f32 %v977, 1.442695
    %v1009 = vpow.pop %v1008
    %v1010 = vadd.f32 %v979, 1.0
    %v1011 = vadd.f32 %v981, 1.0
    %v1012 = vadd.f32 %v983, 1.0
    %v1013 = vadd.f32 %v985, 1.0
    %v1014 = vadd.f32 %v987, 1.0
    %v1015 = vadd.f32 %v989, 1.0
    %v1016 = vadd.f32 %v991, 1.0
    %v1017 = vadd.f32 %v993, 1.0
    %v1018 = vadd.f32 %v995, 1.0
    %v1019 = vadd.f32 %v997, 1.0
    %v1020 = vadd.f32 %v999, 1.0
    %v1021 = vadd.f32 %v1001, 1.0
    %v1022 = vadd.f32 %v1003, 1.0
    %v1023 = vadd.f32 %v1005, 1.0
    %v1024 = vadd.f32 %v1007, 1.0
    %v1025 = vadd.f32 %v1009, 1.0
    %v1026 = vrcp.pop %v1010
    %v1027 = vmul.f32 1.0, %v1026
    %v1028 = vrcp.pop %v1011
    %v1029 = vmul.f32 1.0, %v1028
    %v1030 = vrcp.pop %v1012
    %v1031 = vmul.f32 1.0, %v1030
    %v1032 = vrcp.pop %v1013
    %v1033 = vmul.f32 1.0, %v1032
    %v1034 = vrcp.pop %v1014
    %v1035 = vmul.f32 1.0, %v1034
    %v1036 = vrcp.pop %v1015
    %v1037 = vmul.f32 1.0, %v1036
    %v1038 = vrcp.pop %v1016
    %v1039 = vmul.f32 1.0, %v1038
    %v1040 = vrcp.pop %v1017
    %v1041 = vmul.f32 1.0, %v1040
    %v1042 = vrcp.pop %v1018
    %v1043 = vmul.f32 1.0, %v1042
    %v1044 = vrcp.pop %v1019
    %v1045 = vmul.f32 1.0, %v1044
    %v1046 = vrcp.pop %v1020
    %v1047 = vmul.f32 1.0, %v1046
    %v1048 = vrcp.pop %v1021
    %v1049 = vmul.f32 1.0, %v1048
    %v1050 = vrcp.pop %v1022
    %v1051 = vmul.f32 1.0, %v1050
    %v1052 = vrcp.pop %v1023
    %v1053 = vmul.f32 1.0, %v1052
    %v1054 = vrcp.pop %v1024
    %v1055 = vmul.f32 1.0, %v1054
    %v1056 = vrcp.pop %v1025
    %v1057 = vmul.f32 1.0, %v1056
    %1074 = vset.pattern.permute.xlu0 0
    %1075 = vperm.xlu0 %1074, %v1027
    %v1076 = vpop.permute.xlu0 %1075
    %1077 = vset.pattern.permute.xlu0 0
    %1078 = vperm.xlu0 %1077, %v1029
    %v1079 = vpop.permute.xlu0 %1078
    %1080 = vset.pattern.permute.xlu0 0
    %1081 = vperm.xlu0 %1080, %v1031
    %v1082 = vpop.permute.xlu0 %1081
    %1083 = vset.pattern.permute.xlu0 0
    %1084 = vperm.xlu0 %1083, %v1033
    %v1085 = vpop.permute.xlu0 %1084
    %1086 = vset.pattern.permute.xlu0 0
    %1087 = vperm.xlu0 %1086, %v1035
    %v1088 = vpop.permute.xlu0 %1087
    %1089 = vset.pattern.permute.xlu0 0
    %1090 = vperm.xlu0 %1089, %v1037
    %v1091 = vpop.permute.xlu0 %1090
    %1092 = vset.pattern.permute.xlu0 0
    %1093 = vperm.xlu0 %1092, %v1039
    %v1094 = vpop.permute.xlu0 %1093
    %1095 = vset.pattern.permute.xlu0 0
    %1096 = vperm.xlu0 %1095, %v1041
    %v1097 = vpop.permute.xlu0 %1096
    %1098 = vset.pattern.permute.xlu0 0
    %1099 = vperm.xlu0 %1098, %v1043
    %v1100 = vpop.permute.xlu0 %1099
    %1101 = vset.pattern.permute.xlu0 0
    %1102 = vperm.xlu0 %1101, %v1045
    %v1103 = vpop.permute.xlu0 %1102
    %1104 = vset.pattern.permute.xlu0 0
    %1105 = vperm.xlu0 %1104, %v1047
    %v1106 = vpop.permute.xlu0 %1105
    %1107 = vset.pattern.permute.xlu0 0
    %1108 = vperm.xlu0 %1107, %v1049
    %v1109 = vpop.permute.xlu0 %1108
    %1110 = vset.pattern.permute.xlu0 0
    %1111 = vperm.xlu0 %1110, %v1051
    %v1112 = vpop.permute.xlu0 %1111
    %1113 = vset.pattern.permute.xlu0 0
    %1114 = vperm.xlu0 %1113, %v1053
    %v1115 = vpop.permute.xlu0 %1114
    %1116 = vset.pattern.permute.xlu0 0
    %1117 = vperm.xlu0 %1116, %v1055
    %v1118 = vpop.permute.xlu0 %1117
    %1119 = vset.pattern.permute.xlu0 0
    %1120 = vperm.xlu0 %1119, %v1057
    %v1121 = vpop.permute.xlu0 %1120
    %v1122 = vlaneseq
    %v1123 = vand.u32 %v1122, 127
    %v1124 = vlaneseq
    %v1125 = vshrl.u32 %v1124, 7
    %v1126 = vsub.s32 %v1123, %v1125
    %v1127 = vrot.slane %v1076, %v1126
    %v1128 = vadd.s32 %v1123, 4294967288
    %v1129 = vlaneseq
    %v1130 = vshrl.u32 %v1129, 7
    %v1131 = vsub.s32 %v1128, %v1130
    %v1132 = vrot.slane %v1079, %v1131
    %vm1133 = vcmask 130112
    %v1134 = vsel %vm1133, %v1132, %v1127
    %v1135 = vadd.s32 %v1123, 4294967280
    %v1136 = vlaneseq
    %v1137 = vshrl.u32 %v1136, 7
    %v1138 = vsub.s32 %v1135, %v1137
    %v1139 = vrot.slane %v1082, %v1138
    %vm1140 = vcmask 195712
    %v1141 = vsel %vm1140, %v1139, %v1134
    %v1142 = vadd.s32 %v1123, 4294967272
    %v1143 = vlaneseq
    %v1144 = vshrl.u32 %v1143, 7
    %v1145 = vsub.s32 %v1142, %v1144
    %v1146 = vrot.slane %v1085, %v1145
    %vm1147 = vcmask 261312
    %v1148 = vsel %vm1147, %v1146, %v1141
    %v1149 = vadd.s32 %v1123, 4294967264
    %v1150 = vlaneseq
    %v1151 = vshrl.u32 %v1150, 7
    %v1152 = vsub.s32 %v1149, %v1151
    %v1153 = vrot.slane %v1088, %v1152
    %vm1154 = vcmask 326912
    %v1155 = vsel %vm1154, %v1153, %v1148
    %v1156 = vadd.s32 %v1123, 4294967256
    %v1157 = vlaneseq
    %v1158 = vshrl.u32 %v1157, 7
    %v1159 = vsub.s32 %v1156, %v1158
    %v1160 = vrot.slane %v1091, %v1159
    %vm1161 = vcmask 392512
    %v1162 = vsel %vm1161, %v1160, %v1155
    %v1163 = vadd.s32 %v1123, 4294967248
    %v1164 = vlaneseq
    %v1165 = vshrl.u32 %v1164, 7
    %v1166 = vsub.s32 %v1163, %v1165
    %v1167 = vrot.slane %v1094, %v1166
    %vm1168 = vcmask 458112
    %v1169 = vsel %vm1168, %v1167, %v1162
    %v1170 = vadd.s32 %v1123, 4294967240
    %v1171 = vlaneseq
    %v1172 = vshrl.u32 %v1171, 7
    %v1173 = vsub.s32 %v1170, %v1172
    %v1174 = vrot.slane %v1097, %v1173
    %vm1175 = vcmask 523712
    %v1176 = vsel %vm1175, %v1174, %v1169
    %v1177 = vadd.s32 %v1123, 4294967232
    %v1178 = vlaneseq
    %v1179 = vshrl.u32 %v1178, 7
    %v1180 = vsub.s32 %v1177, %v1179
    %v1181 = vrot.slane %v1100, %v1180
    %vm1182 = vcmask 589312
    %v1183 = vsel %vm1182, %v1181, %v1176
    %v1184 = vadd.s32 %v1123, 4294967224
    %v1185 = vlaneseq
    %v1186 = vshrl.u32 %v1185, 7
    %v1187 = vsub.s32 %v1184, %v1186
    %v1188 = vrot.slane %v1103, %v1187
    %vm1189 = vcmask 654912
    %v1190 = vsel %vm1189, %v1188, %v1183
    %v1191 = vadd.s32 %v1123, 4294967216
    %v1192 = vlaneseq
    %v1193 = vshrl.u32 %v1192, 7
    %v1194 = vsub.s32 %v1191, %v1193
    %v1195 = vrot.slane %v1106, %v1194
    %vm1196 = vcmask 720512
    %v1197 = vsel %vm1196, %v1195, %v1190
    %v1198 = vadd.s32 %v1123, 4294967208
    %v1199 = vlaneseq
    %v1200 = vshrl.u32 %v1199, 7
    %v1201 = vsub.s32 %v1198, %v1200
    %v1202 = vrot.slane %v1109, %v1201
    %vm1203 = vcmask 786112
    %v1204 = vsel %vm1203, %v1202, %v1197
    %v1205 = vadd.s32 %v1123, 4294967200
    %v1206 = vlaneseq
    %v1207 = vshrl.u32 %v1206, 7
    %v1208 = vsub.s32 %v1205, %v1207
    %v1209 = vrot.slane %v1112, %v1208
    %vm1210 = vcmask 851712
    %v1211 = vsel %vm1210, %v1209, %v1204
    %v1212 = vadd.s32 %v1123, 4294967192
    %v1213 = vlaneseq
    %v1214 = vshrl.u32 %v1213, 7
    %v1215 = vsub.s32 %v1212, %v1214
    %v1216 = vrot.slane %v1115, %v1215
    %vm1217 = vcmask 917312
    %v1218 = vsel %vm1217, %v1216, %v1211
    %v1219 = vadd.s32 %v1123, 4294967184
    %v1220 = vlaneseq
    %v1221 = vshrl.u32 %v1220, 7
    %v1222 = vsub.s32 %v1219, %v1221
    %v1223 = vrot.slane %v1118, %v1222
    %vm1224 = vcmask 982912
    %v1225 = vsel %vm1224, %v1223, %v1218
    %v1226 = vadd.s32 %v1123, 4294967176
    %v1227 = vlaneseq
    %v1228 = vshrl.u32 %v1227, 7
    %v1229 = vsub.s32 %v1226, %v1228
    %v1230 = vrot.slane %v1121, %v1229
    %vm1231 = vcmask 1048512
    %v1232 = vsel %vm1231, %v1230, %v1225
    %1234 = vst [vmem:[#allocation5] sm:$0x1] %v1232
    // Predicated region
    $region14: #{tpu_custom_call.1} parent=1 // pred_check
      _
    $region15: #{tpu_custom_call.1} parent=1 // pred_check_branch
      %1236 = sbr.rel (0) target = $region17
    $region16: #{tpu_custom_call.1} parent=1 // pred_region
      %s1238 = ssub.s32 16, 16
      %1239 = vsyncadd [#allocation4], %s1238
      %s1241 = sshll.u32 [#allocation5], 4
      %s1242 = int_to_ptr.vmem [resolvable:$true] %s1241
      %1244 = dma.vmem_to_hbm [thread:$0]  %s1242, 16, %s2, [#allocation4]
    $region17: #{tpu_custom_call.1} parent=1 // pred_fallthru
      _
    // Predicated region
    $region18: #{tpu_custom_call.1} parent=1 // pred_check
      _
    $region19: #{tpu_custom_call.1} parent=1 // pred_check_branch
      %1246 = sbr.rel (0) target = $region21
    $region20: #{tpu_custom_call.1} parent=1 // pred_region
      %1247 = dma.done [#allocation4], 16
    $region21: #{tpu_custom_call.1} parent=1 // pred_fallthru
      _
    %1248 = vsyncpa [#allocation3], 1
    %1249 = vsyncpa [#allocation4], 1

</llo_original>
